<compile_context>
chip_gen: v5e
topology: v5e:2x2
jax: 0.10.0
libtpu: 0.0.40
codegen_flags: <defaults>
</compile_context>

<pallas_src>
import functools
import inspect
import math

import jax
import jax.numpy as jnp
from jax.experimental import pallas as pl
from jax.experimental.pallas import tpu as pltpu


def _round_up(n: int, m: int) -> int:
    return ((n + m - 1) // m) * m


def _cdiv(a: int, b: int) -> int:
    return (a + b - 1) // b


def _has_pipeline_mode() -> bool:
    # Feature check (instead of a broad try/except around execution): only use
    # pipeline_mode / pl.Buffered if this Pallas build exposes them.
    if not hasattr(pl, "Buffered"):
        return False
    try:
        return "pipeline_mode" in inspect.signature(pl.BlockSpec).parameters
    except (TypeError, ValueError):
        return False


_HAS_PIPELINE_MODE = _has_pipeline_mode()


def _vmem_capacity_bytes() -> int:
    # Best-effort hardware query; conservative default = v7x (64 MiB / TC).
    try:
        return int(pltpu.get_tpu_info().vmem_capacity_bytes)
    except Exception:
        return 64 * 2**20


# ----------------------------- kernels ------------------------------------ #

def _gate_mul(z, half, gate_dtype, out_dtype):
    # z: (tm, 2*half) f32.  Optionally do the sigmoid/multiply in bf16
    # (v6e/v7x EUP/VPU support it); default keeps f32.
    if gate_dtype is not None:
        z = z.astype(gate_dtype)
    gated = jax.nn.sigmoid(z[:, :half])
    return (gated * z[:, half:]).astype(out_dtype)


def _swiglu_kernel_resident(x_ref, w01_ref, wo_ref, scale_ref, o_ref, *,
                            eps, gate_dtype):
    # Weights fully resident (nf == 1): no accumulator, single grid axis.
    F = wo_ref.shape[0]
    x = x_ref[...]
    z = jnp.dot(x, w01_ref[...], preferred_element_type=jnp.float32)
    ff = _gate_mul(z, F, gate_dtype, wo_ref.dtype)
    o = jnp.dot(ff, wo_ref[...], preferred_element_type=jnp.float32)
    ms = jnp.mean(o * o, axis=-1, keepdims=True)
    normed = o * jax.lax.rsqrt(ms + eps) * scale_ref[...]
    # Padded (zero) rows pass through rsqrt(eps) harmlessly: 0 * finite = 0,
    # and they are sliced off in the wrapper before reshape.
    o_ref[...] = (normed + x.astype(jnp.float32)).astype(o_ref.dtype)


def _swiglu_kernel_streamed(x_ref, w01_ref, wo_ref, scale_ref, o_ref, acc_ref,
                            *, eps, gate_dtype):
    # F-tiled reduction over grid axis 1 with an f32 accumulator.
    tf = wo_ref.shape[0]
    f = pl.program_id(1)

    @pl.when(f == 0)
    def _():
        acc_ref[...] = jnp.zeros_like(acc_ref)

    x = x_ref[...]
    z = jnp.dot(x, w01_ref[...], preferred_element_type=jnp.float32)
    ff = _gate_mul(z, tf, gate_dtype, wo_ref.dtype)
    acc_ref[...] += jnp.dot(ff, wo_ref[...], preferred_element_type=jnp.float32)

    @pl.when(f == pl.num_programs(1) - 1)
    def _():
        o = acc_ref[...]
        ms = jnp.mean(o * o, axis=-1, keepdims=True)
        normed = o * jax.lax.rsqrt(ms + eps) * scale_ref[...]
        o_ref[...] = (normed + x.astype(jnp.float32)).astype(o_ref.dtype)


# ----------------------------- wrapper ------------------------------------ #

def _choose_tf(H, F, w_isize, budget):
    """Largest tf (multiple of 128 dividing F) whose tile set fits `budget`."""
    # Resident feasibility: weights loaded once; single-buffered when
    # pipeline_mode is available, else double-buffered.
    wbuf = 1 if _HAS_PIPELINE_MODE else 2
    tm_est = 256
    resident = (wbuf * 3 * H * F * w_isize        # W0|W1 (2HF) + Wo (HF)
                + 4 * tm_est * H * 4              # x + out tiles, double-buffered
                + tm_est * 2 * F * 4              # z temp (f32)
                + tm_est * F * w_isize            # ff temp
                + 2 * H * 4)                      # scale
    if resident <= budget:
        return F
    # Streamed: largest divisor of F that is a multiple of 128 and fits.
    tm_est = 512
    units = F // 128
    for d in range(units, 0, -1):
        if units % d:
            continue
        t = 128 * d
        need = (2 * 3 * H * t * w_isize
                + 4 * tm_est * H * 4
                + tm_est * H * 4                  # accumulator
                + tm_est * 2 * t * 4
                + tm_est * t * w_isize
                + 2 * H * 4)
        if need <= budget:
            return t
    return 128


def make_swiglu(w0, w1, wo, scale, *, eps=1e-5, tm=None, tf=None,
                gate_dtype=None):
    """Plan tiling and pack weights ONCE; return a jitted apply(x)->[B,S,H].

    w0, w1: [H, F]  (stored in_dim x out_dim, i.e. transposed vs nn.Linear)
    wo:     [F, H]
    scale:  [H]     RMSNorm affine weight
    """
    H, F = w0.shape
    assert w1.shape == (H, F) and wo.shape == (F, H) and scale.shape == (H,)
    assert H % 128 == 0 and F % 128 == 0, "LinearProjection forces 128-aligned dims"

    w_isize = jnp.dtype(wo.dtype).itemsize
    vmem_cap = _vmem_capacity_bytes()
    budget = int(vmem_cap * 0.75)          # working-set budget
    cap = int(vmem_cap * 0.80)             # scoped vmem_limit cap (~51MiB v7x)

    if tf is None:
        tf = _choose_tf(H, F, w_isize, budget)
    assert F % tf == 0 and tf % 128 == 0, "tf must be a multiple of 128 dividing F"
    nf = F // tf

    # Pack [W0_tile | W1_tile] slabs once (parameter-init time), never per call.
    # Layout: (nf*H, 2*tf); row block f*H:(f+1)*H holds F-tile f.
    w01 = jnp.concatenate(
        [w0.reshape(H, nf, tf), w1.reshape(H, nf, tf)], axis=2
    ).transpose(1, 0, 2).reshape(nf * H, 2 * tf)
    w01 = jax.block_until_ready(w01)
    scale2 = scale.astype(jnp.float32).reshape(1, H)

    tm_req = tm
    use_buffered = _HAS_PIPELINE_MODE

    def _apply(x):
        B, S, H_ = x.shape
        assert H_ == H
        N = B * S
        x_isize = jnp.dtype(x.dtype).itemsize
        row_align = 16 if x_isize < 4 else 8   # sublane packing for bf16

        # ---- token tile ----
        t = tm_req if tm_req is not None else (512 if nf > 1 else 256)
        t = _round_up(max(min(t, N), row_align), row_align)
        # Megacore: keep >= 2 token tiles when possible so both v7x TCs work.
        if N > row_align:
            t = min(t, _round_up(_cdiv(N, 2), row_align))

        # ---- VMEM accounting (includes in-kernel z / ff temporaries) ----
        def vmem_need(t_, wbuf_):
            n = (4 * t_ * H * x_isize              # x + out tiles, double-buffered
                 + wbuf_ * 3 * H * tf * w_isize    # W0|W1 + Wo tiles
                 + 2 * H * 4                       # scale
                 + t_ * 2 * tf * 4                 # z temp (f32)
                 + t_ * tf * max(w_isize, 2))      # ff temp (weight dtype)
            if nf > 1:
                n += t_ * H * 4                    # f32 accumulator scratch
            return n

        if nf > 1:
            # Deeper weight pipeline when it fits (hides HBM DMA latency).
            wbuf = 3 if (use_buffered and vmem_need(t, 3) <= budget) else 2
        else:
            # Constant-index weights: drop to single-buffering only when
            # double-buffering would not fit (Buffered(1) saves VMEM only).
            wbuf = 2 if (not use_buffered or vmem_need(t, 2) <= budget) else 1

        # Shrink the token tile if the tile set still exceeds the budget.
        while vmem_need(t, wbuf) > budget and t > row_align:
            t = max(row_align, _round_up(t // 2, row_align))

        Np = _round_up(N, t)
        num_m = Np // t

        x2 = x.reshape(N, H)
        if Np != N:
            x2p = jnp.pad(x2, ((0, Np - N), (0, 0)))
        else:
            x2p = x2

        need = vmem_need(t, wbuf)
        vmem_limit = min(max(int(need * 3 // 2), 32 * 2**20), cap)

        # Advisory cost: weights are re-streamed per token tile when nf > 1.
        w_reads = num_m if nf > 1 else 1
        cost = pl.CostEstimate(
            flops=int(6 * Np * H * F),
            transcendentals=int(Np * F),
            bytes_accessed=int(2 * Np * H * x_isize
                               + w_reads * 3 * H * F * w_isize + H * 4),
        )

        def wspec(shape, index_map, bufs):
            if use_buffered and bufs != 2:
                return pl.BlockSpec(shape, index_map,
                                    pipeline_mode=pl.Buffered(bufs))
            return pl.BlockSpec(shape, index_map)

        if nf == 1:
            kernel = functools.partial(_swiglu_kernel_resident,
                                       eps=eps, gate_dtype=gate_dtype)
            grid = (num_m,)
            in_specs = [
                pl.BlockSpec((t, H), lambda i: (i, 0)),          # x tile
                wspec((H, 2 * F), lambda i: (0, 0), wbuf),       # W0|W1 (resident)
                wspec((F, H), lambda i: (0, 0), wbuf),           # Wo (resident)
                wspec((1, H), lambda i: (0, 0), wbuf),           # rms scale
            ]
            out_specs = pl.BlockSpec((t, H), lambda i: (i, 0))
            scratch = []
            dimsem = ("parallel",)
        else:
            kernel = functools.partial(_swiglu_kernel_streamed,
                                       eps=eps, gate_dtype=gate_dtype)
            grid = (num_m, nf)
            in_specs = [
                pl.BlockSpec((t, H), lambda i, f: (i, 0)),       # x tile
                wspec((H, 2 * tf), lambda i, f: (f, 0), wbuf),   # W0|W1 tile
                wspec((tf, H), lambda i, f: (f, 0), wbuf),       # Wo tile
                pl.BlockSpec((1, H), lambda i, f: (0, 0)),       # rms scale
            ]
            out_specs = pl.BlockSpec((t, H), lambda i, f: (i, 0))
            scratch = [pltpu.VMEM((t, H), jnp.float32)]
            dimsem = ("parallel", "arbitrary")

        out = pl.pallas_call(
            kernel,
            out_shape=jax.ShapeDtypeStruct((Np, H), x.dtype),
            grid_spec=pltpu.PrefetchScalarGridSpec(
                num_scalar_prefetch=0,
                grid=grid,
                in_specs=in_specs,
                out_specs=out_specs,
                scratch_shapes=scratch,
            ),
            compiler_params=pltpu.CompilerParams(
                dimension_semantics=dimsem,
                vmem_limit_bytes=vmem_limit),
            cost_estimate=cost,
        )(x2p, w01, wo, scale2)

        return out[:N].reshape(B, S, H)

    return jax.jit(_apply)


# ----------------------------- reference / test ---------------------------- #

def _trunc_normal(key, shape, std):
    # matches nn.init.trunc_normal_(mean=0, std=std, a=-2*std, b=2*std)
    return std * jax.random.truncated_normal(key, -2.0, 2.0, shape, jnp.float32)


def _reference(x, w0, w1, wo, scale, eps=1e-5):
    # Mirrors the kernel's dtype handling (matmuls at input/weight dtype with
    # f32 accumulation; RMSNorm / residual in f32).
    g = jax.nn.sigmoid(jnp.dot(x, w0, preferred_element_type=jnp.float32))
    u = jnp.dot(x, w1, preferred_element_type=jnp.float32)
    ff = (g * u).astype(wo.dtype)
    o = jnp.dot(ff, wo, preferred_element_type=jnp.float32)
    ms = jnp.mean(o * o, axis=-1, keepdims=True)
    normed = o * jax.lax.rsqrt(ms + eps) * scale.astype(jnp.float32)
    return (normed + x.astype(jnp.float32)).astype(x.dtype)


if __name__ == "__main__":
    # Small shapes consistent with the module: hidden_size=128 (LinearProjection
    # forces multiples of 128), mlp_dim_mult=4.0 -> ffn_dim=512.
    B, S, H = 2, 8, 128
    F = H * 4

    key = jax.random.PRNGKey(0)
    kx, k0, k1, ko = jax.random.split(key, 4)

    x = jax.random.normal(kx, (B, S, H), jnp.float32)
    # LinearProjection init: std = 1/sqrt(out_dim) (as written in the module).
    w0 = _trunc_normal(k0, (H, F), 1.0 / math.sqrt(F))   # wi_0, stored (in, out)
    w1 = _trunc_normal(k1, (H, F), 1.0 / math.sqrt(F))   # wi_1
    wo = _trunc_normal(ko, (F, H), 1.0 / math.sqrt(H))   # wo
    scale = jnp.ones((H,), jnp.float32)                  # RMSNorm weight init = 1

    ref = _reference(x, w0, w1, wo, scale)

    # --- f32, auto config (resident weights, nf == 1, no accumulator axis) ---
    fwd = make_swiglu(w0, w1, wo, scale)
    out = jax.block_until_ready(fwd(x))
    assert out.shape == x.shape
    assert jnp.allclose(out, ref, atol=1e-4, rtol=1e-4)

    # --- f32, forced F-tiling (tf=128 -> nf=4): exercises the streamed path ---
    fwd_s = make_swiglu(w0, w1, wo, scale, tf=128)
    out_s = jax.block_until_ready(fwd_s(x))
    assert jnp.allclose(out_s, ref, atol=1e-4, rtol=1e-4)

    # --- bf16 MXU path (performance configuration): loose check ---
    xb = x.astype(jnp.bfloat16)
    w0b, w1b, wob = (t.astype(jnp.bfloat16) for t in (w0, w1, wo))
    fwd_b = make_swiglu(w0b, w1b, wob, scale)
    out_b = jax.block_until_ready(fwd_b(xb))
    ref_b = _reference(xb, w0b, w1b, wob, scale)
    assert jnp.allclose(out_b.astype(jnp.float32), ref_b.astype(jnp.float32),
                        atol=3e-2, rtol=3e-2)

    print("KERNEL_OK")
</pallas_src>

<mosaic_0001>
module attributes {stable_mosaic.version = 11 : i64} {
  func.func @_swiglu_kernel_resident(%arg0: i32, %arg1: memref<8x128xf32, #tpu.memory_space<vmem>>, %arg2: memref<128x1024xf32, #tpu.memory_space<vmem>>, %arg3: memref<512x128xf32, #tpu.memory_space<vmem>>, %arg4: memref<1x128xf32, #tpu.memory_space<vmem>>, %arg5: memref<8x128xf32, #tpu.memory_space<vmem>>) attributes {dimension_semantics = [#tpu.dimension_semantics<parallel>], iteration_bounds = array<i64: 2>, scalar_prefetch = 0 : i64, scratch_operands = 0 : i64, tpu.core_type = #tpu.core_type<tc>, window_params = [{transform_indices = @transform_0, window_bounds = array<i64: 8, 128>}, {pipeline_mode = #tpu.pipeline_mode<synchronous>, transform_indices = @transform_1, window_bounds = array<i64: 128, 1024>}, {pipeline_mode = #tpu.pipeline_mode<synchronous>, transform_indices = @transform_2, window_bounds = array<i64: 512, 128>}, {pipeline_mode = #tpu.pipeline_mode<synchronous>, transform_indices = @transform_3, window_bounds = array<i64: 1, 128>}, {transform_indices = @transform_4, window_bounds = array<i64: 8, 128>}]} {
    %c0 = arith.constant 0 : index
    %c0_0 = arith.constant 0 : index
    %0 = vector.load %arg1[%c0, %c0_0] : memref<8x128xf32, #tpu.memory_space<vmem>>, vector<8x128xf32>
    %c0_1 = arith.constant 0 : index
    %c0_2 = arith.constant 0 : index
    %1 = vector.load %arg2[%c0_1, %c0_2] : memref<128x1024xf32, #tpu.memory_space<vmem>>, vector<128x1024xf32>
    %cst = arith.constant dense<0.000000e+00> : vector<8x1024xf32>
    %2 = tpu.matmul %0, %1, %cst {dimension_numbers = #tpu.dot_dimension_numbers<[1], [0], [0], [1], [0, 0, 1, 1], [], []>} : vector<8x128xf32>, vector<128x1024xf32>, vector<8x1024xf32> -> vector<8x1024xf32>
    %3 = vector.extract_strided_slice %2 {offsets = [0, 0], sizes = [8, 512], strides = [1, 1]} : vector<8x1024xf32> to vector<8x512xf32>
    %4 = arith.negf %3 : vector<8x512xf32>
    %5 = math.exp %4 : vector<8x512xf32>
    %cst_3 = arith.constant 1.000000e+00 : f32
    %6 = vector.broadcast %cst_3 : f32 to vector<8x512xf32>
    %7 = arith.addf %6, %5 : vector<8x512xf32>
    %8 = arith.divf %6, %7 : vector<8x512xf32>
    %9 = vector.extract_strided_slice %2 {offsets = [0, 512], sizes = [8, 512], strides = [1, 1]} : vector<8x1024xf32> to vector<8x512xf32>
    %10 = arith.mulf %8, %9 : vector<8x512xf32>
    %c0_4 = arith.constant 0 : index
    %c0_5 = arith.constant 0 : index
    %11 = vector.load %arg3[%c0_4, %c0_5] : memref<512x128xf32, #tpu.memory_space<vmem>>, vector<512x128xf32>
    %cst_6 = arith.constant dense<0.000000e+00> : vector<8x128xf32>
    %12 = tpu.matmul %10, %11, %cst_6 {dimension_numbers = #tpu.dot_dimension_numbers<[1], [0], [0], [1], [0, 0, 1, 1], [], []>} : vector<8x512xf32>, vector<512x128xf32>, vector<8x128xf32> -> vector<8x128xf32>
    %13 = arith.mulf %12, %12 : vector<8x128xf32>
    %cst_7 = arith.constant dense<0.000000e+00> : vector<8xf32>
    %14 = vector.multi_reduction <add>, %13, %cst_7 [1] : vector<8x128xf32> to vector<8xf32>
    %15 = vector.shape_cast %14 : vector<8xf32> to vector<8x1xf32>
    %cst_8 = arith.constant 1.280000e+02 : f32
    %16 = vector.broadcast %cst_8 : f32 to vector<8x1xf32>
    %17 = arith.divf %15, %16 : vector<8x1xf32>
    %cst_9 = arith.constant 9.99999974E-6 : f32
    %18 = vector.broadcast %cst_9 : f32 to vector<8x1xf32>
    %19 = arith.addf %17, %18 : vector<8x1xf32>
    %20 = math.rsqrt %19 : vector<8x1xf32>
    %21 = vector.broadcast %20 : vector<8x1xf32> to vector<8x128xf32>
    %22 = arith.mulf %12, %21 : vector<8x128xf32>
    %c0_10 = arith.constant 0 : index
    %c0_11 = arith.constant 0 : index
    %23 = vector.load %arg4[%c0_10, %c0_11] : memref<1x128xf32, #tpu.memory_space<vmem>>, vector<1x128xf32>
    %24 = vector.broadcast %23 : vector<1x128xf32> to vector<8x128xf32>
    %25 = arith.mulf %22, %24 : vector<8x128xf32>
    %26 = arith.addf %25, %0 : vector<8x128xf32>
    %c0_12 = arith.constant 0 : index
    %c0_13 = arith.constant 0 : index
    %27 = vector.load %arg5[%c0_12, %c0_13] : memref<8x128xf32, #tpu.memory_space<vmem>>, vector<8x128xf32>
    tpu.vector_store %arg5[%c0_12, %c0_13], %26 {strides = array<i32>} : memref<8x128xf32, #tpu.memory_space<vmem>>, vector<8x128xf32>,
    return
  }
  func.func @transform_0(%arg0: i32) -> (i32, i32) {
    %c0_i32 = arith.constant 0 : i32
    %c0_i32_0 = arith.constant 0 : i32
    return %arg0, %c0_i32 : i32, i32
  }
  func.func @transform_1(%arg0: i32) -> (i32, i32) {
    %c0_i32 = arith.constant 0 : i32
    %c0_i32_0 = arith.constant 0 : i32
    %c0_i32_1 = arith.constant 0 : i32
    return %c0_i32, %c0_i32_0 : i32, i32
  }
  func.func @transform_2(%arg0: i32) -> (i32, i32) {
    %c0_i32 = arith.constant 0 : i32
    %c0_i32_0 = arith.constant 0 : i32
    %c0_i32_1 = arith.constant 0 : i32
    return %c0_i32, %c0_i32_0 : i32, i32
  }
  func.func @transform_3(%arg0: i32) -> (i32, i32) {
    %c0_i32 = arith.constant 0 : i32
    %c0_i32_0 = arith.constant 0 : i32
    %c0_i32_1 = arith.constant 0 : i32
    return %c0_i32, %c0_i32_0 : i32, i32
  }
  func.func @transform_4(%arg0: i32) -> (i32, i32) {
    %c0_i32 = arith.constant 0 : i32
    %c0_i32_0 = arith.constant 0 : i32
    return %arg0, %c0_i32 : i32, i32
  }
}

</mosaic_0001>

<llo_original>
// kernel: _apply.1
$region0: #{_apply.1}
  #allocation0 [shape = 'u32[]', space=smem, size = 0x4, offset = 0x4, fixed_abs, tag = 'smem constant byte address 0x4 - core index']
  #allocation1 [shape = 'u32[72,128]{1,0:T(1,128)}', space=vmem, size = 0x9000, scoped, tag = 'internal scratch']
  %s0 = inlined_call_operand.hbm [shape: f32[16,128], index: 0, kind: input, shape index: {}]
  %s1 = inlined_call_operand.hbm [shape: f32[128,1024], index: 1, kind: input, shape index: {}]
  %s2 = inlined_call_operand.hbm [shape: f32[512,128], index: 2, kind: input, shape index: {}]
  %s3 = inlined_call_operand.vmem [shape: f32[1,128], index: 3, kind: input, shape index: {}]
  %s4 = inlined_call_operand.hbm [shape: f32[16,128], index: 4, kind: output, shape index: {}]
  %s5 = sld [smem:[#allocation0]]
  $region61: #{_apply.1} parent=0
    _
  %s7 = ssub.s32 1, %s5
  %s8 = scalar_select 0, %s7, %s5
  $region1: #{_apply.1} parent=0
    #allocation2 [shape = 'u8[8192]{0}', space=vmem, size = 0x2000, scoped, tag = 'input window, operand 0']
    #allocation3 [shape = 's32[2]{0}', space=sflag, size = 0x8, scoped, tag = 'scoped memory for _apply.1']
    #allocation4 [shape = 's32[2]{0}', space=sflag, size = 0x8, scoped, tag = 'scoped memory for _apply.1']
    #allocation5 [shape = 'u8[524288]{0}', space=vmem, size = 0x80000, scoped, tag = 'input window, operand 1, single buffered']
    #allocation6 [shape = 's32[1]{0}', space=sflag, size = 0x4, scoped, tag = 'scoped memory for _apply.1']
    #allocation7 [shape = 'u8[262144]{0}', space=vmem, size = 0x40000, scoped, tag = 'input window, operand 2, single buffered']
    #allocation8 [shape = 'u8[8192]{0}', space=vmem, size = 0x2000, scoped, tag = 'output window, operand 0']
    %9 = vsyncpa [#allocation3], 0
    %s10 = scalar_lea.sflag [#allocation3], 1
    %11 = vsyncpa %s10, 0
    %12 = vsyncpa [#allocation6], 0
    %13 = vsyncpa [#allocation4], 0
    %s14 = scalar_lea.sflag [#allocation4], 1
    %15 = vsyncpa %s14, 0
    loop: start=0, step=1, limit=4
    $region2: #{_apply.1} parent=1 // loop_pre_header
      _
    $region3: #{_apply.1} parent=1 // loop_header
      %s17 = sphi 0, %s21
      %p18 = scmp.ge.s32.totalorder %s17, 4
      %s27 = sphi 0, %s29
      %s30 = sphi 0, %s27
      %s31 = sphi 0, %s30
      %s47 = sphi 0, %s31
      %s51 = sphi 0, %s51
      %s53 = sphi 0, %s51
      %s54 = sphi 0, %s53
      %s68 = sphi 0, %s54
      %s72 = sphi 0, %s72
      %s74 = sphi 0, %s72
      %s75 = sphi 0, %s74
      %s89 = sphi 0, %s75
      %s93 = sphi 0, %s93
      %s95 = sphi 0, %s93
      %s96 = sphi 0, %s95
      %s110 = sphi 0, %s96
      %s116 = sphi 0, %s118
      %s119 = sphi 0, %s116
      %s120 = sphi 0, %s119
      %s136 = sphi 0, %s120
    $region4: #{_apply.1} parent=1 // loop_header_branch
      %20 = sbr.rel (%p18) target = $region8
    $region5: #{_apply.1} parent=1 // loop_body
      %s22 = ssub.s32 %s17, 1
      %s23 = ssub.s32 %s17, 2
      %s24 = sadd.s32 %s17, 1
      %s25 = ssub.s32 %s17, %s24
      %p26 = scmp.eq.s32.totalorder %s25, 0
      %s28 = sadd.s32 %s27, 1
      %s29 = scalar_select %p26, %s27, %s28
      %p32 = pneg %p26
      %p33 = scmp.eq.s32.totalorder %s17, 1
      %p34 = por %p32, %p33
      %p35 = scmp.ne.s32.totalorder %s27, %s30
      %p36 = scmp.eq.s32.totalorder %s17, 0
      %p37 = por %p35, %p36
      %p38 = scmp.ne.s32.totalorder %s27, %s30
      %p39 = scmp.eq.s32.totalorder %s22, 1
      %p40 = por %p38, %p39
      %p41 = scmp.ne.s32.totalorder %s30, %s31
      %p42 = scmp.eq.s32.totalorder %s22, 0
      %p43 = por %p41, %p42
      %p44 = scmp.ne.s32.totalorder %s30, %s31
      %p45 = scmp.eq.s32.totalorder %s23, 1
      %p46 = por %p44, %p45
      %p48 = scmp.ne.s32.totalorder %s31, %s47
      %p49 = scmp.eq.s32.totalorder %s23, 0
      %p50 = por %p48, %p49
      %s52 = sadd.s32 %s51, 1
      %p55 = scmp.eq.s32.totalorder %s17, 1
      %p56 = scmp.ne.s32.totalorder %s51, %s53
      %p57 = scmp.eq.s32.totalorder %s17, 0
      %p58 = por %p56, %p57
      %p59 = scmp.ne.s32.totalorder %s51, %s53
      %p60 = scmp.eq.s32.totalorder %s22, 1
      %p61 = por %p59, %p60
      %p62 = scmp.ne.s32.totalorder %s53, %s54
      %p63 = scmp.eq.s32.totalorder %s22, 0
      %p64 = por %p62, %p63
      %p65 = scmp.ne.s32.totalorder %s53, %s54
      %p66 = scmp.eq.s32.totalorder %s23, 1
      %p67 = por %p65, %p66
      %p69 = scmp.ne.s32.totalorder %s54, %s68
      %p70 = scmp.eq.s32.totalorder %s23, 0
      %p71 = por %p69, %p70
      %s73 = sadd.s32 %s72, 1
      %p76 = scmp.eq.s32.totalorder %s17, 1
      %p77 = scmp.ne.s32.totalorder %s72, %s74
      %p78 = scmp.eq.s32.totalorder %s17, 0
      %p79 = por %p77, %p78
      %p80 = scmp.ne.s32.totalorder %s72, %s74
      %p81 = scmp.eq.s32.totalorder %s22, 1
      %p82 = por %p80, %p81
      %p83 = scmp.ne.s32.totalorder %s74, %s75
      %p84 = scmp.eq.s32.totalorder %s22, 0
      %p85 = por %p83, %p84
      %p86 = scmp.ne.s32.totalorder %s74, %s75
      %p87 = scmp.eq.s32.totalorder %s23, 1
      %p88 = por %p86, %p87
      %p90 = scmp.ne.s32.totalorder %s75, %s89
      %p91 = scmp.eq.s32.totalorder %s23, 0
      %p92 = por %p90, %p91
      %s94 = sadd.s32 %s93, 1
      %p97 = scmp.eq.s32.totalorder %s17, 1
      %p98 = scmp.ne.s32.totalorder %s93, %s95
      %p99 = scmp.eq.s32.totalorder %s17, 0
      %p100 = por %p98, %p99
      %p101 = scmp.ne.s32.totalorder %s93, %s95
      %p102 = scmp.eq.s32.totalorder %s22, 1
      %p103 = por %p101, %p102
      %p104 = scmp.ne.s32.totalorder %s95, %s96
      %p105 = scmp.eq.s32.totalorder %s22, 0
      %p106 = por %p104, %p105
      %p107 = scmp.ne.s32.totalorder %s95, %s96
      %p108 = scmp.eq.s32.totalorder %s23, 1
      %p109 = por %p107, %p108
      %p111 = scmp.ne.s32.totalorder %s96, %s110
      %p112 = scmp.eq.s32.totalorder %s23, 0
      %p113 = por %p111, %p112
      %s114 = ssub.s32 %s17, %s24
      %p115 = scmp.eq.s32.totalorder %s114, 0
      %s117 = sadd.s32 %s116, 1
      %s118 = scalar_select %p115, %s116, %s117
      %p121 = pneg %p115
      %p122 = scmp.eq.s32.totalorder %s17, 1
      %p123 = por %p121, %p122
      %p124 = scmp.ne.s32.totalorder %s116, %s119
      %p125 = scmp.eq.s32.totalorder %s17, 0
      %p126 = por %p124, %p125
      %p127 = scmp.ne.s32.totalorder %s116, %s119
      %p128 = scmp.eq.s32.totalorder %s22, 1
      %p129 = por %p127, %p128
      %p130 = scmp.ne.s32.totalorder %s119, %s120
      %p131 = scmp.eq.s32.totalorder %s22, 0
      %p132 = por %p130, %p131
      %p133 = scmp.ne.s32.totalorder %s119, %s120
      %p134 = scmp.eq.s32.totalorder %s23, 1
      %p135 = por %p133, %p134
      %p137 = scmp.ne.s32.totalorder %s120, %s136
      %p138 = scmp.eq.s32.totalorder %s23, 0
      %p139 = por %p137, %p138
      %p140 = scmp.le.s32.totalorder 1, %s17
      %p141 = scmp.lt.s32.totalorder %s17, 3
      %p142 = pnand %p140, %p141
      %p143 = pneg %p142
      // Predicated region
      $region9: #{_apply.1} parent=5 // pred_check
        _
      $region10: #{_apply.1} parent=5 // pred_check_branch
        %145 = sbr.rel (%p142) target = $region12
      $region11: #{_apply.1} parent=5 // pred_region
        %s146 = ssub.s32 %s17, 1
        // Predicated region
        $region13: #{_apply.1} parent=11 // pred_check
          %p147 = pneg %p64
        $region14: #{_apply.1} parent=11 // pred_check_branch
          %149 = sbr.rel (%p147) target = $region16
        $region15: #{_apply.1} parent=11 // pred_region
          %151 = vsyncadd [#allocation6], 0
          %s152 = sshll.u32 %s1, 4
          %s153 = int_to_ptr.hbm [resolvable:$true] %s152
          %s154 = sshll.u32 [#allocation5], 4
          %s155 = int_to_ptr.vmem [resolvable:$true] %s154
          %160 = dma.hbm_to_vmem [thread:$0]  %s153, 16384, %s155, [#allocation6], 1024, 1024, 64
        $region16: #{_apply.1} parent=11 // pred_fallthru
          _
        // Predicated region
        $region17: #{_apply.1} parent=11 // pred_check
          %p161 = pneg %p85
        $region18: #{_apply.1} parent=11 // pred_check_branch
          %163 = sbr.rel (%p161) target = $region20
        $region19: #{_apply.1} parent=11 // pred_region
          %165 = vsyncadd [#allocation6], 0
          %s166 = sshll.u32 %s2, 4
          %s167 = int_to_ptr.hbm [resolvable:$true] %s166
          %s168 = sshll.u32 [#allocation7], 4
          %s169 = int_to_ptr.vmem [resolvable:$true] %s168
          %174 = dma.hbm_to_vmem [thread:$0]  %s167, 8192, %s169, [#allocation6], 128, 128, 8
        $region20: #{_apply.1} parent=11 // pred_fallthru
          _
        // Predicated region
        $region21: #{_apply.1} parent=11 // pred_check
          %p175 = pneg %p106
        $region22: #{_apply.1} parent=11 // pred_check_branch
          %177 = sbr.rel (%p175) target = $region24
        $region23: #{_apply.1} parent=11 // pred_region
          _
        $region24: #{_apply.1} parent=11 // pred_fallthru
          _
      $region12: #{_apply.1} parent=5 // pred_fallthru
        _
      %p178 = scmp.lt.s32.totalorder %s17, 2
      // Predicated region
      $region25: #{_apply.1} parent=5 // pred_check
        %p179 = pneg %p178
      $region26: #{_apply.1} parent=5 // pred_check_branch
        %181 = sbr.rel (%p179) target = $region28
      $region27: #{_apply.1} parent=5 // pred_region
        // Predicated region
        $region29: #{_apply.1} parent=27 // pred_check
          %p182 = pneg %p37
        $region30: #{_apply.1} parent=27 // pred_check_branch
          %184 = sbr.rel (%p182) target = $region32
        $region31: #{_apply.1} parent=27 // pred_region
          %s185 = sand.u32 %s27, 1
          %s186 = scalar_lea.sflag [#allocation3], %s185
          %s187 = sand.u32 %s27, 1
          %s188 = smul.addr %s187, 8
          %s189 = scalar_lea.vmem [#allocation2], %s188
          %191 = vsyncadd %s186, 0
          %s192 = smul.addr %s17, 8
          %s193 = scalar_lea.hbm %s0, %s192
          %s195 = sshll.u32 %s193, 4
          %s196 = int_to_ptr.hbm [resolvable:$true] %s195
          %s197 = sshll.u32 %s189, 4
          %s198 = int_to_ptr.vmem [resolvable:$true] %s197
          %200 = dma.hbm_to_vmem [thread:$0]  %s196, 128, %s198, %s186
        $region32: #{_apply.1} parent=27 // pred_fallthru
          _
      $region28: #{_apply.1} parent=5 // pred_fallthru
        _
      %p201 = scmp.le.s32.totalorder 1, %s17
      %p202 = scmp.lt.s32.totalorder %s17, 3
      %p203 = pnand %p201, %p202
      %p204 = pneg %p203
      // Predicated region
      $region33: #{_apply.1} parent=5 // pred_check
        _
      $region34: #{_apply.1} parent=5 // pred_check_branch
        %206 = sbr.rel (%p203) target = $region36
      $region35: #{_apply.1} parent=5 // pred_region
        %s207 = ssub.s32 %s17, 1
        %s208 = sand.u32 %s30, 1
        %s209 = scalar_lea.sflag [#allocation3], %s208
        %s210 = sand.u32 %s30, 1
        %s211 = smul.addr %s210, 8
        %s212 = scalar_lea.vmem [#allocation2], %s211
        // Predicated region
        $region37: #{_apply.1} parent=35 // pred_check
          %p213 = pneg %p43
        $region38: #{_apply.1} parent=35 // pred_check_branch
          %215 = sbr.rel (%p213) target = $region40
        $region39: #{_apply.1} parent=35 // pred_region
          %217 = dma.done %s209, 128
        $region40: #{_apply.1} parent=35 // pred_fallthru
          _
        // Predicated region
        $region41: #{_apply.1} parent=35 // pred_check
          %p218 = pneg %p64
        $region42: #{_apply.1} parent=35 // pred_check_branch
          %220 = sbr.rel (%p218) target = $region44
        $region43: #{_apply.1} parent=35 // pred_region
          %222 = dma.done [#allocation6], 16384
        $region44: #{_apply.1} parent=35 // pred_fallthru
          _
        // Predicated region
        $region45: #{_apply.1} parent=35 // pred_check
          %p223 = pneg %p85
        $region46: #{_apply.1} parent=35 // pred_check_branch
          %225 = sbr.rel (%p223) target = $region48
        $region47: #{_apply.1} parent=35 // pred_region
          %227 = dma.done [#allocation6], 8192
        $region48: #{_apply.1} parent=35 // pred_fallthru
          _
        %s228 = sand.u32 %s30, 1
        %s229 = scalar_lea.sflag [#allocation3], %s228
        %s230 = sand.u32 %s30, 1
        %s231 = smul.addr %s230, 8
        %s232 = scalar_lea.vmem [#allocation2], %s231
        %p233 = pneg %p43
        %p234 = pneg %p40
        %p235 = pneg %p64
        %p236 = pneg %p61
        %p237 = pneg %p85
        %p238 = pneg %p82
        %p239 = pneg %p106
        %p240 = pneg %p103
        %p241 = pneg %p132
        %p242 = pneg %p129
        %s243 = sand.u32 %s119, 1
        %s244 = scalar_lea.sflag [#allocation4], %s243
        %s245 = sand.u32 %s119, 1
        %s246 = smul.addr %s245, 8
        %s247 = scalar_lea.vmem [#allocation8], %s246
        %v248 = vld [vmem:[%s212] sm:$0xff]
        %v249 = vld [vmem:[#allocation5] sm:$0xff]
        %v250 = vld [vmem:[#allocation5 + $0x8] sm:$0xff]
        %v251 = vld [vmem:[#allocation5 + $0x10] sm:$0xff]
        %v252 = vld [vmem:[#allocation5 + $0x18] sm:$0xff]
        %v253 = vld [vmem:[#allocation5 + $0x20] sm:$0xff]
        %v254 = vld [vmem:[#allocation5 + $0x28] sm:$0xff]
        %v255 = vld [vmem:[#allocation5 + $0x30] sm:$0xff]
        %v256 = vld [vmem:[#allocation5 + $0x38] sm:$0xff]
        %v257 = vld [vmem:[#allocation5 + $0x40] sm:$0xff]
        %v258 = vld [vmem:[#allocation5 + $0x48] sm:$0xff]
        %v259 = vld [vmem:[#allocation5 + $0x50] sm:$0xff]
        %v260 = vld [vmem:[#allocation5 + $0x58] sm:$0xff]
        %v261 = vld [vmem:[#allocation5 + $0x60] sm:$0xff]
        %v262 = vld [vmem:[#allocation5 + $0x68] sm:$0xff]
        %v263 = vld [vmem:[#allocation5 + $0x70] sm:$0xff]
        %v264 = vld [vmem:[#allocation5 + $0x78] sm:$0xff]
        %v265 = vld [vmem:[#allocation5 + $0x80] sm:$0xff]
        %v266 = vld [vmem:[#allocation5 + $0x88] sm:$0xff]
        %v267 = vld [vmem:[#allocation5 + $0x90] sm:$0xff]
        %v268 = vld [vmem:[#allocation5 + $0x98] sm:$0xff]
        %v269 = vld [vmem:[#allocation5 + $0xa0] sm:$0xff]
        %v270 = vld [vmem:[#allocation5 + $0xa8] sm:$0xff]
        %v271 = vld [vmem:[#allocation5 + $0xb0] sm:$0xff]
        %v272 = vld [vmem:[#allocation5 + $0xb8] sm:$0xff]
        %v273 = vld [vmem:[#allocation5 + $0xc0] sm:$0xff]
        %v274 = vld [vmem:[#allocation5 + $0xc8] sm:$0xff]
        %v275 = vld [vmem:[#allocation5 + $0xd0] sm:$0xff]
        %v276 = vld [vmem:[#allocation5 + $0xd8] sm:$0xff]
        %v277 = vld [vmem:[#allocation5 + $0xe0] sm:$0xff]
        %v278 = vld [vmem:[#allocation5 + $0xe8] sm:$0xff]
        %v279 = vld [vmem:[#allocation5 + $0xf0] sm:$0xff]
        %v280 = vld [vmem:[#allocation5 + $0xf8] sm:$0xff]
        %v281 = vld [vmem:[#allocation5 + $0x100] sm:$0xff]
        %v282 = vld [vmem:[#allocation5 + $0x108] sm:$0xff]
        %v283 = vld [vmem:[#allocation5 + $0x110] sm:$0xff]
        %v284 = vld [vmem:[#allocation5 + $0x118] sm:$0xff]
        %v285 = vld [vmem:[#allocation5 + $0x120] sm:$0xff]
        %v286 = vld [vmem:[#allocation5 + $0x128] sm:$0xff]
        %v287 = vld [vmem:[#allocation5 + $0x130] sm:$0xff]
        %v288 = vld [vmem:[#allocation5 + $0x138] sm:$0xff]
        %v289 = vld [vmem:[#allocation5 + $0x140] sm:$0xff]
        %v290 = vld [vmem:[#allocation5 + $0x148] sm:$0xff]
        %v291 = vld [vmem:[#allocation5 + $0x150] sm:$0xff]
        %v292 = vld [vmem:[#allocation5 + $0x158] sm:$0xff]
        %v293 = vld [vmem:[#allocation5 + $0x160] sm:$0xff]
        %v294 = vld [vmem:[#allocation5 + $0x168] sm:$0xff]
        %v295 = vld [vmem:[#allocation5 + $0x170] sm:$0xff]
        %v296 = vld [vmem:[#allocation5 + $0x178] sm:$0xff]
        %v297 = vld [vmem:[#allocation5 + $0x180] sm:$0xff]
        %v298 = vld [vmem:[#allocation5 + $0x188] sm:$0xff]
        %v299 = vld [vmem:[#allocation5 + $0x190] sm:$0xff]
        %v300 = vld [vmem:[#allocation5 + $0x198] sm:$0xff]
        %v301 = vld [vmem:[#allocation5 + $0x1a0] sm:$0xff]
        %v302 = vld [vmem:[#allocation5 + $0x1a8] sm:$0xff]
        %v303 = vld [vmem:[#allocation5 + $0x1b0] sm:$0xff]
        %v304 = vld [vmem:[#allocation5 + $0x1b8] sm:$0xff]
        %v305 = vld [vmem:[#allocation5 + $0x1c0] sm:$0xff]
        %v306 = vld [vmem:[#allocation5 + $0x1c8] sm:$0xff]
        %v307 = vld [vmem:[#allocation5 + $0x1d0] sm:$0xff]
        %v308 = vld [vmem:[#allocation5 + $0x1d8] sm:$0xff]
        %v309 = vld [vmem:[#allocation5 + $0x1e0] sm:$0xff]
        %v310 = vld [vmem:[#allocation5 + $0x1e8] sm:$0xff]
        %v311 = vld [vmem:[#allocation5 + $0x1f0] sm:$0xff]
        %v312 = vld [vmem:[#allocation5 + $0x1f8] sm:$0xff]
        %v313 = vld [vmem:[#allocation5 + $0x200] sm:$0xff]
        %v314 = vld [vmem:[#allocation5 + $0x208] sm:$0xff]
        %v315 = vld [vmem:[#allocation5 + $0x210] sm:$0xff]
        %v316 = vld [vmem:[#allocation5 + $0x218] sm:$0xff]
        %v317 = vld [vmem:[#allocation5 + $0x220] sm:$0xff]
        %v318 = vld [vmem:[#allocation5 + $0x228] sm:$0xff]
        %v319 = vld [vmem:[#allocation5 + $0x230] sm:$0xff]
        %v320 = vld [vmem:[#allocation5 + $0x238] sm:$0xff]
        %v321 = vld [vmem:[#allocation5 + $0x240] sm:$0xff]
        %v322 = vld [vmem:[#allocation5 + $0x248] sm:$0xff]
        %v323 = vld [vmem:[#allocation5 + $0x250] sm:$0xff]
        %v324 = vld [vmem:[#allocation5 + $0x258] sm:$0xff]
        %v325 = vld [vmem:[#allocation5 + $0x260] sm:$0xff]
        %v326 = vld [vmem:[#allocation5 + $0x268] sm:$0xff]
        %v327 = vld [vmem:[#allocation5 + $0x270] sm:$0xff]
        %v328 = vld [vmem:[#allocation5 + $0x278] sm:$0xff]
        %v329 = vld [vmem:[#allocation5 + $0x280] sm:$0xff]
        %v330 = vld [vmem:[#allocation5 + $0x288] sm:$0xff]
        %v331 = vld [vmem:[#allocation5 + $0x290] sm:$0xff]
        %v332 = vld [vmem:[#allocation5 + $0x298] sm:$0xff]
        %v333 = vld [vmem:[#allocation5 + $0x2a0] sm:$0xff]
        %v334 = vld [vmem:[#allocation5 + $0x2a8] sm:$0xff]
        %v335 = vld [vmem:[#allocation5 + $0x2b0] sm:$0xff]
        %v336 = vld [vmem:[#allocation5 + $0x2b8] sm:$0xff]
        %v337 = vld [vmem:[#allocation5 + $0x2c0] sm:$0xff]
        %v338 = vld [vmem:[#allocation5 + $0x2c8] sm:$0xff]
        %v339 = vld [vmem:[#allocation5 + $0x2d0] sm:$0xff]
        %v340 = vld [vmem:[#allocation5 + $0x2d8] sm:$0xff]
        %v341 = vld [vmem:[#allocation5 + $0x2e0] sm:$0xff]
        %v342 = vld [vmem:[#allocation5 + $0x2e8] sm:$0xff]
        %v343 = vld [vmem:[#allocation5 + $0x2f0] sm:$0xff]
        %v344 = vld [vmem:[#allocation5 + $0x2f8] sm:$0xff]
        %v345 = vld [vmem:[#allocation5 + $0x300] sm:$0xff]
        %v346 = vld [vmem:[#allocation5 + $0x308] sm:$0xff]
        %v347 = vld [vmem:[#allocation5 + $0x310] sm:$0xff]
        %v348 = vld [vmem:[#allocation5 + $0x318] sm:$0xff]
        %v349 = vld [vmem:[#allocation5 + $0x320] sm:$0xff]
        %v350 = vld [vmem:[#allocation5 + $0x328] sm:$0xff]
        %v351 = vld [vmem:[#allocation5 + $0x330] sm:$0xff]
        %v352 = vld [vmem:[#allocation5 + $0x338] sm:$0xff]
        %v353 = vld [vmem:[#allocation5 + $0x340] sm:$0xff]
        %v354 = vld [vmem:[#allocation5 + $0x348] sm:$0xff]
        %v355 = vld [vmem:[#allocation5 + $0x350] sm:$0xff]
        %v356 = vld [vmem:[#allocation5 + $0x358] sm:$0xff]
        %v357 = vld [vmem:[#allocation5 + $0x360] sm:$0xff]
        %v358 = vld [vmem:[#allocation5 + $0x368] sm:$0xff]
        %v359 = vld [vmem:[#allocation5 + $0x370] sm:$0xff]
        %v360 = vld [vmem:[#allocation5 + $0x378] sm:$0xff]
        %v361 = vld [vmem:[#allocation5 + $0x380] sm:$0xff]
        %v362 = vld [vmem:[#allocation5 + $0x388] sm:$0xff]
        %v363 = vld [vmem:[#allocation5 + $0x390] sm:$0xff]
        %v364 = vld [vmem:[#allocation5 + $0x398] sm:$0xff]
        %v365 = vld [vmem:[#allocation5 + $0x3a0] sm:$0xff]
        %v366 = vld [vmem:[#allocation5 + $0x3a8] sm:$0xff]
        %v367 = vld [vmem:[#allocation5 + $0x3b0] sm:$0xff]
        %v368 = vld [vmem:[#allocation5 + $0x3b8] sm:$0xff]
        %v369 = vld [vmem:[#allocation5 + $0x3c0] sm:$0xff]
        %v370 = vld [vmem:[#allocation5 + $0x3c8] sm:$0xff]
        %v371 = vld [vmem:[#allocation5 + $0x3d0] sm:$0xff]
        %v372 = vld [vmem:[#allocation5 + $0x3d8] sm:$0xff]
        %v373 = vld [vmem:[#allocation5 + $0x3e0] sm:$0xff]
        %v374 = vld [vmem:[#allocation5 + $0x3e8] sm:$0xff]
        %v375 = vld [vmem:[#allocation5 + $0x3f0] sm:$0xff]
        %v376 = vld [vmem:[#allocation5 + $0x3f8] sm:$0xff]
        %377 = vmatpush.msra.mxu0 %v369
        %378 = vmatpush.msra.mxu0 %v361
        %379 = vmatpush.msra.mxu0 %v353
        %380 = vmatpush.msra.mxu0 %v345
        %381 = vmatpush.msra.mxu0 %v337
        %382 = vmatpush.msra.mxu0 %v329
        %383 = vmatpush.msra.mxu0 %v321
        %384 = vmatpush.msra.mxu0 %v313
        %385 = vmatpush.msra.mxu0 %v305
        %386 = vmatpush.msra.mxu0 %v297
        %387 = vmatpush.msra.mxu0 %v289
        %388 = vmatpush.msra.mxu0 %v281
        %389 = vmatpush.msra.mxu0 %v273
        %390 = vmatpush.msra.mxu0 %v265
        %391 = vmatpush.msra.mxu0 %v257
        %392 = vmatpush.msra.mxu0 %v249
        %393 = vmatmul.f32.gmra.mxu0 %v248
        %v394 = vpop.f32.mrf.mxu0
        %v395 = vadd.f32 0.0, %v394
        %396 = vdwg.mxu0
        %397 = vmatpush.msra.mxu0 %v370
        %398 = vmatpush.msra.mxu0 %v362
        %399 = vmatpush.msra.mxu0 %v354
        %400 = vmatpush.msra.mxu0 %v346
        %401 = vmatpush.msra.mxu0 %v338
        %402 = vmatpush.msra.mxu0 %v330
        %403 = vmatpush.msra.mxu0 %v322
        %404 = vmatpush.msra.mxu0 %v314
        %405 = vmatpush.msra.mxu0 %v306
        %406 = vmatpush.msra.mxu0 %v298
        %407 = vmatpush.msra.mxu0 %v290
        %408 = vmatpush.msra.mxu0 %v282
        %409 = vmatpush.msra.mxu0 %v274
        %410 = vmatpush.msra.mxu0 %v266
        %411 = vmatpush.msra.mxu0 %v258
        %412 = vmatpush.msra.mxu0 %v250
        %413 = vmatmul.f32.gmra.mxu0 %v248
        %v414 = vpop.f32.mrf.mxu0
        %v415 = vadd.f32 0.0, %v414
        %416 = vdwg.mxu0
        %417 = vmatpush.msra.mxu0 %v371
        %418 = vmatpush.msra.mxu0 %v363
        %419 = vmatpush.msra.mxu0 %v355
        %420 = vmatpush.msra.mxu0 %v347
        %421 = vmatpush.msra.mxu0 %v339
        %422 = vmatpush.msra.mxu0 %v331
        %423 = vmatpush.msra.mxu0 %v323
        %424 = vmatpush.msra.mxu0 %v315
        %425 = vmatpush.msra.mxu0 %v307
        %426 = vmatpush.msra.mxu0 %v299
        %427 = vmatpush.msra.mxu0 %v291
        %428 = vmatpush.msra.mxu0 %v283
        %429 = vmatpush.msra.mxu0 %v275
        %430 = vmatpush.msra.mxu0 %v267
        %431 = vmatpush.msra.mxu0 %v259
        %432 = vmatpush.msra.mxu0 %v251
        %433 = vmatmul.f32.gmra.mxu0 %v248
        %v434 = vpop.f32.mrf.mxu0
        %v435 = vadd.f32 0.0, %v434
        %436 = vdwg.mxu0
        %437 = vmatpush.msra.mxu0 %v372
        %438 = vmatpush.msra.mxu0 %v364
        %439 = vmatpush.msra.mxu0 %v356
        %440 = vmatpush.msra.mxu0 %v348
        %441 = vmatpush.msra.mxu0 %v340
        %442 = vmatpush.msra.mxu0 %v332
        %443 = vmatpush.msra.mxu0 %v324
        %444 = vmatpush.msra.mxu0 %v316
        %445 = vmatpush.msra.mxu0 %v308
        %446 = vmatpush.msra.mxu0 %v300
        %447 = vmatpush.msra.mxu0 %v292
        %448 = vmatpush.msra.mxu0 %v284
        %449 = vmatpush.msra.mxu0 %v276
        %450 = vmatpush.msra.mxu0 %v268
        %451 = vmatpush.msra.mxu0 %v260
        %452 = vmatpush.msra.mxu0 %v252
        %453 = vmatmul.f32.gmra.mxu0 %v248
        %v454 = vpop.f32.mrf.mxu0
        %v455 = vadd.f32 0.0, %v454
        %456 = vdwg.mxu0
        %457 = vmatpush.msra.mxu0 %v373
        %458 = vmatpush.msra.mxu0 %v365
        %459 = vmatpush.msra.mxu0 %v357
        %460 = vmatpush.msra.mxu0 %v349
        %461 = vmatpush.msra.mxu0 %v341
        %462 = vmatpush.msra.mxu0 %v333
        %463 = vmatpush.msra.mxu0 %v325
        %464 = vmatpush.msra.mxu0 %v317
        %465 = vmatpush.msra.mxu0 %v309
        %466 = vmatpush.msra.mxu0 %v301
        %467 = vmatpush.msra.mxu0 %v293
        %468 = vmatpush.msra.mxu0 %v285
        %469 = vmatpush.msra.mxu0 %v277
        %470 = vmatpush.msra.mxu0 %v269
        %471 = vmatpush.msra.mxu0 %v261
        %472 = vmatpush.msra.mxu0 %v253
        %473 = vmatmul.f32.gmra.mxu0 %v248
        %v474 = vpop.f32.mrf.mxu0
        %v475 = vadd.f32 0.0, %v474
        %476 = vdwg.mxu0
        %477 = vmatpush.msra.mxu0 %v374
        %478 = vmatpush.msra.mxu0 %v366
        %479 = vmatpush.msra.mxu0 %v358
        %480 = vmatpush.msra.mxu0 %v350
        %481 = vmatpush.msra.mxu0 %v342
        %482 = vmatpush.msra.mxu0 %v334
        %483 = vmatpush.msra.mxu0 %v326
        %484 = vmatpush.msra.mxu0 %v318
        %485 = vmatpush.msra.mxu0 %v310
        %486 = vmatpush.msra.mxu0 %v302
        %487 = vmatpush.msra.mxu0 %v294
        %488 = vmatpush.msra.mxu0 %v286
        %489 = vmatpush.msra.mxu0 %v278
        %490 = vmatpush.msra.mxu0 %v270
        %491 = vmatpush.msra.mxu0 %v262
        %492 = vmatpush.msra.mxu0 %v254
        %493 = vmatmul.f32.gmra.mxu0 %v248
        %v494 = vpop.f32.mrf.mxu0
        %v495 = vadd.f32 0.0, %v494
        %496 = vdwg.mxu0
        %497 = vmatpush.msra.mxu0 %v375
        %498 = vmatpush.msra.mxu0 %v367
        %499 = vmatpush.msra.mxu0 %v359
        %500 = vmatpush.msra.mxu0 %v351
        %501 = vmatpush.msra.mxu0 %v343
        %502 = vmatpush.msra.mxu0 %v335
        %503 = vmatpush.msra.mxu0 %v327
        %504 = vmatpush.msra.mxu0 %v319
        %505 = vmatpush.msra.mxu0 %v311
        %506 = vmatpush.msra.mxu0 %v303
        %507 = vmatpush.msra.mxu0 %v295
        %508 = vmatpush.msra.mxu0 %v287
        %509 = vmatpush.msra.mxu0 %v279
        %510 = vmatpush.msra.mxu0 %v271
        %511 = vmatpush.msra.mxu0 %v263
        %512 = vmatpush.msra.mxu0 %v255
        %513 = vmatmul.f32.gmra.mxu0 %v248
        %v514 = vpop.f32.mrf.mxu0
        %v515 = vadd.f32 0.0, %v514
        %516 = vdwg.mxu0
        %517 = vmatpush.msra.mxu0 %v376
        %518 = vmatpush.msra.mxu0 %v368
        %519 = vmatpush.msra.mxu0 %v360
        %520 = vmatpush.msra.mxu0 %v352
        %521 = vmatpush.msra.mxu0 %v344
        %522 = vmatpush.msra.mxu0 %v336
        %523 = vmatpush.msra.mxu0 %v328
        %524 = vmatpush.msra.mxu0 %v320
        %525 = vmatpush.msra.mxu0 %v312
        %526 = vmatpush.msra.mxu0 %v304
        %527 = vmatpush.msra.mxu0 %v296
        %528 = vmatpush.msra.mxu0 %v288
        %529 = vmatpush.msra.mxu0 %v280
        %530 = vmatpush.msra.mxu0 %v272
        %531 = vmatpush.msra.mxu0 %v264
        %532 = vmatpush.msra.mxu0 %v256
        %533 = vmatmul.f32.gmra.mxu0 %v248
        %v534 = vpop.f32.mrf.mxu0
        %v535 = vadd.f32 0.0, %v534
        %536 = vdwg.mxu0
        %v537 = vxor.u32 %v395, 2147483648
        %v538 = vxor.u32 %v415, 2147483648
        %v539 = vxor.u32 %v435, 2147483648
        %v540 = vxor.u32 %v455, 2147483648
        %v541 = vmul.f32 %v537, 1.442695
        %v542 = vpow.pop %v541
        %v543 = vmul.f32 %v538, 1.442695
        %v544 = vpow.pop %v543
        %v545 = vmul.f32 %v539, 1.442695
        %v546 = vpow.pop %v545
        %v547 = vmul.f32 %v540, 1.442695
        %v548 = vpow.pop %v547
        %v549 = vadd.f32 %v542, 1.0
        %v550 = vadd.f32 %v544, 1.0
        %v551 = vadd.f32 %v546, 1.0
        %v552 = vadd.f32 %v548, 1.0
        %v553 = vrcp.pop %v549
        %v554 = vmul.f32 %v549, %v553
        %v555 = vsub.f32 1.0, %v554
        %v556 = vmul.f32 %v553, %v555
        %v557 = vadd.f32 %v553, %v556
        %vm558 = vweird.f32 %v549
        %vm559 = vweird.f32 %v553
        %vm560 = vmor %vm558, %vm559
        %v561 = vsel %vm560, %v553, %v557
        %v562 = vand.u32 2147483647, %v549
        %vm563 = vcmp.eq.f32.partialorder %v562, 8.507059e+37
        %v564 = vand.u32 %v549, 2147483648
        %v565 = vor.u32 1.1754944e-38, %v564
        %v566 = vsel %vm563, %v565, %v561
        %v567 = vmul.f32 1.0, %v566
        %v568 = vrcp.pop %v550
        %v569 = vmul.f32 %v550, %v568
        %v570 = vsub.f32 1.0, %v569
        %v571 = vmul.f32 %v568, %v570
        %v572 = vadd.f32 %v568, %v571
        %vm573 = vweird.f32 %v550
        %vm574 = vweird.f32 %v568
        %vm575 = vmor %vm573, %vm574
        %v576 = vsel %vm575, %v568, %v572
        %v577 = vand.u32 2147483647, %v550
        %vm578 = vcmp.eq.f32.partialorder %v577, 8.507059e+37
        %v579 = vand.u32 %v550, 2147483648
        %v580 = vor.u32 1.1754944e-38, %v579
        %v581 = vsel %vm578, %v580, %v576
        %v582 = vmul.f32 1.0, %v581
        %v583 = vrcp.pop %v551
        %v584 = vmul.f32 %v551, %v583
        %v585 = vsub.f32 1.0, %v584
        %v586 = vmul.f32 %v583, %v585
        %v587 = vadd.f32 %v583, %v586
        %vm588 = vweird.f32 %v551
        %vm589 = vweird.f32 %v583
        %vm590 = vmor %vm588, %vm589
        %v591 = vsel %vm590, %v583, %v587
        %v592 = vand.u32 2147483647, %v551
        %vm593 = vcmp.eq.f32.partialorder %v592, 8.507059e+37
        %v594 = vand.u32 %v551, 2147483648
        %v595 = vor.u32 1.1754944e-38, %v594
        %v596 = vsel %vm593, %v595, %v591
        %v597 = vmul.f32 1.0, %v596
        %v598 = vrcp.pop %v552
        %v599 = vmul.f32 %v552, %v598
        %v600 = vsub.f32 1.0, %v599
        %v601 = vmul.f32 %v598, %v600
        %v602 = vadd.f32 %v598, %v601
        %vm603 = vweird.f32 %v552
        %vm604 = vweird.f32 %v598
        %vm605 = vmor %vm603, %vm604
        %v606 = vsel %vm605, %v598, %v602
        %v607 = vand.u32 2147483647, %v552
        %vm608 = vcmp.eq.f32.partialorder %v607, 8.507059e+37
        %v609 = vand.u32 %v552, 2147483648
        %v610 = vor.u32 1.1754944e-38, %v609
        %v611 = vsel %vm608, %v610, %v606
        %v612 = vmul.f32 1.0, %v611
        %v613 = vmul.f32 %v567, %v475
        %v614 = vmul.f32 %v582, %v495
        %v615 = vmul.f32 %v597, %v515
        %v616 = vmul.f32 %v612, %v535
        %v617 = vld [vmem:[#allocation7] sm:$0xff]
        %v618 = vld [vmem:[#allocation7 + $0x8] sm:$0xff]
        %v619 = vld [vmem:[#allocation7 + $0x10] sm:$0xff]
        %v620 = vld [vmem:[#allocation7 + $0x18] sm:$0xff]
        %v621 = vld [vmem:[#allocation7 + $0x20] sm:$0xff]
        %v622 = vld [vmem:[#allocation7 + $0x28] sm:$0xff]
        %v623 = vld [vmem:[#allocation7 + $0x30] sm:$0xff]
        %v624 = vld [vmem:[#allocation7 + $0x38] sm:$0xff]
        %v625 = vld [vmem:[#allocation7 + $0x40] sm:$0xff]
        %v626 = vld [vmem:[#allocation7 + $0x48] sm:$0xff]
        %v627 = vld [vmem:[#allocation7 + $0x50] sm:$0xff]
        %v628 = vld [vmem:[#allocation7 + $0x58] sm:$0xff]
        %v629 = vld [vmem:[#allocation7 + $0x60] sm:$0xff]
        %v630 = vld [vmem:[#allocation7 + $0x68] sm:$0xff]
        %v631 = vld [vmem:[#allocation7 + $0x70] sm:$0xff]
        %v632 = vld [vmem:[#allocation7 + $0x78] sm:$0xff]
        %v633 = vld [vmem:[#allocation7 + $0x80] sm:$0xff]
        %v634 = vld [vmem:[#allocation7 + $0x88] sm:$0xff]
        %v635 = vld [vmem:[#allocation7 + $0x90] sm:$0xff]
        %v636 = vld [vmem:[#allocation7 + $0x98] sm:$0xff]
        %v637 = vld [vmem:[#allocation7 + $0xa0] sm:$0xff]
        %v638 = vld [vmem:[#allocation7 + $0xa8] sm:$0xff]
        %v639 = vld [vmem:[#allocation7 + $0xb0] sm:$0xff]
        %v640 = vld [vmem:[#allocation7 + $0xb8] sm:$0xff]
        %v641 = vld [vmem:[#allocation7 + $0xc0] sm:$0xff]
        %v642 = vld [vmem:[#allocation7 + $0xc8] sm:$0xff]
        %v643 = vld [vmem:[#allocation7 + $0xd0] sm:$0xff]
        %v644 = vld [vmem:[#allocation7 + $0xd8] sm:$0xff]
        %v645 = vld [vmem:[#allocation7 + $0xe0] sm:$0xff]
        %v646 = vld [vmem:[#allocation7 + $0xe8] sm:$0xff]
        %v647 = vld [vmem:[#allocation7 + $0xf0] sm:$0xff]
        %v648 = vld [vmem:[#allocation7 + $0xf8] sm:$0xff]
        %v649 = vld [vmem:[#allocation7 + $0x100] sm:$0xff]
        %v650 = vld [vmem:[#allocation7 + $0x108] sm:$0xff]
        %v651 = vld [vmem:[#allocation7 + $0x110] sm:$0xff]
        %v652 = vld [vmem:[#allocation7 + $0x118] sm:$0xff]
        %v653 = vld [vmem:[#allocation7 + $0x120] sm:$0xff]
        %v654 = vld [vmem:[#allocation7 + $0x128] sm:$0xff]
        %v655 = vld [vmem:[#allocation7 + $0x130] sm:$0xff]
        %v656 = vld [vmem:[#allocation7 + $0x138] sm:$0xff]
        %v657 = vld [vmem:[#allocation7 + $0x140] sm:$0xff]
        %v658 = vld [vmem:[#allocation7 + $0x148] sm:$0xff]
        %v659 = vld [vmem:[#allocation7 + $0x150] sm:$0xff]
        %v660 = vld [vmem:[#allocation7 + $0x158] sm:$0xff]
        %v661 = vld [vmem:[#allocation7 + $0x160] sm:$0xff]
        %v662 = vld [vmem:[#allocation7 + $0x168] sm:$0xff]
        %v663 = vld [vmem:[#allocation7 + $0x170] sm:$0xff]
        %v664 = vld [vmem:[#allocation7 + $0x178] sm:$0xff]
        %v665 = vld [vmem:[#allocation7 + $0x180] sm:$0xff]
        %v666 = vld [vmem:[#allocation7 + $0x188] sm:$0xff]
        %v667 = vld [vmem:[#allocation7 + $0x190] sm:$0xff]
        %v668 = vld [vmem:[#allocation7 + $0x198] sm:$0xff]
        %v669 = vld [vmem:[#allocation7 + $0x1a0] sm:$0xff]
        %v670 = vld [vmem:[#allocation7 + $0x1a8] sm:$0xff]
        %v671 = vld [vmem:[#allocation7 + $0x1b0] sm:$0xff]
        %v672 = vld [vmem:[#allocation7 + $0x1b8] sm:$0xff]
        %v673 = vld [vmem:[#allocation7 + $0x1c0] sm:$0xff]
        %v674 = vld [vmem:[#allocation7 + $0x1c8] sm:$0xff]
        %v675 = vld [vmem:[#allocation7 + $0x1d0] sm:$0xff]
        %v676 = vld [vmem:[#allocation7 + $0x1d8] sm:$0xff]
        %v677 = vld [vmem:[#allocation7 + $0x1e0] sm:$0xff]
        %v678 = vld [vmem:[#allocation7 + $0x1e8] sm:$0xff]
        %v679 = vld [vmem:[#allocation7 + $0x1f0] sm:$0xff]
        %v680 = vld [vmem:[#allocation7 + $0x1f8] sm:$0xff]
        %681 = vmatpush.msra.mxu0 %v632
        %682 = vmatpush.msra.mxu0 %v631
        %683 = vmatpush.msra.mxu0 %v630
        %684 = vmatpush.msra.mxu0 %v629
        %685 = vmatpush.msra.mxu0 %v628
        %686 = vmatpush.msra.mxu0 %v627
        %687 = vmatpush.msra.mxu0 %v626
        %688 = vmatpush.msra.mxu0 %v625
        %689 = vmatpush.msra.mxu0 %v624
        %690 = vmatpush.msra.mxu0 %v623
        %691 = vmatpush.msra.mxu0 %v622
        %692 = vmatpush.msra.mxu0 %v621
        %693 = vmatpush.msra.mxu0 %v620
        %694 = vmatpush.msra.mxu0 %v619
        %695 = vmatpush.msra.mxu0 %v618
        %696 = vmatpush.msra.mxu0 %v617
        %697 = vmatmul.f32.gmra.mxu0 %v613
        %v698 = vpop.f32.mrf.mxu0
        %v699 = vadd.f32 0.0, %v698
        %700 = vdwg.mxu0
        %701 = vmatpush.msra.mxu0 %v648
        %702 = vmatpush.msra.mxu0 %v647
        %703 = vmatpush.msra.mxu0 %v646
        %704 = vmatpush.msra.mxu0 %v645
        %705 = vmatpush.msra.mxu0 %v644
        %706 = vmatpush.msra.mxu0 %v643
        %707 = vmatpush.msra.mxu0 %v642
        %708 = vmatpush.msra.mxu0 %v641
        %709 = vmatpush.msra.mxu0 %v640
        %710 = vmatpush.msra.mxu0 %v639
        %711 = vmatpush.msra.mxu0 %v638
        %712 = vmatpush.msra.mxu0 %v637
        %713 = vmatpush.msra.mxu0 %v636
        %714 = vmatpush.msra.mxu0 %v635
        %715 = vmatpush.msra.mxu0 %v634
        %716 = vmatpush.msra.mxu0 %v633
        %717 = vmatmul.f32.gmra.mxu0 %v614
        %v718 = vpop.f32.mrf.mxu0
        %v719 = vadd.f32 %v699, %v718
        %720 = vdwg.mxu0
        %721 = vmatpush.msra.mxu0 %v664
        %722 = vmatpush.msra.mxu0 %v663
        %723 = vmatpush.msra.mxu0 %v662
        %724 = vmatpush.msra.mxu0 %v661
        %725 = vmatpush.msra.mxu0 %v660
        %726 = vmatpush.msra.mxu0 %v659
        %727 = vmatpush.msra.mxu0 %v658
        %728 = vmatpush.msra.mxu0 %v657
        %729 = vmatpush.msra.mxu0 %v656
        %730 = vmatpush.msra.mxu0 %v655
        %731 = vmatpush.msra.mxu0 %v654
        %732 = vmatpush.msra.mxu0 %v653
        %733 = vmatpush.msra.mxu0 %v652
        %734 = vmatpush.msra.mxu0 %v651
        %735 = vmatpush.msra.mxu0 %v650
        %736 = vmatpush.msra.mxu0 %v649
        %737 = vmatmul.f32.gmra.mxu0 %v615
        %v738 = vpop.f32.mrf.mxu0
        %v739 = vadd.f32 %v719, %v738
        %740 = vdwg.mxu0
        %741 = vmatpush.msra.mxu0 %v680
        %742 = vmatpush.msra.mxu0 %v679
        %743 = vmatpush.msra.mxu0 %v678
        %744 = vmatpush.msra.mxu0 %v677
        %745 = vmatpush.msra.mxu0 %v676
        %746 = vmatpush.msra.mxu0 %v675
        %747 = vmatpush.msra.mxu0 %v674
        %748 = vmatpush.msra.mxu0 %v673
        %749 = vmatpush.msra.mxu0 %v672
        %750 = vmatpush.msra.mxu0 %v671
        %751 = vmatpush.msra.mxu0 %v670
        %752 = vmatpush.msra.mxu0 %v669
        %753 = vmatpush.msra.mxu0 %v668
        %754 = vmatpush.msra.mxu0 %v667
        %755 = vmatpush.msra.mxu0 %v666
        %756 = vmatpush.msra.mxu0 %v665
        %757 = vmatmul.f32.gmra.mxu0 %v616
        %v758 = vpop.f32.mrf.mxu0
        %v759 = vadd.f32 %v739, %v758
        %760 = vdwg.mxu0
        %v761 = vmul.f32 %v759, %v759
        %762 = vadd.xlane.f32.xlu0 %v761
        %v763 = vpop.xlane.xlu0 %762
        %v764 = vrcp.pop 128.0
        %v765 = vmul.f32 128.0, %v764
        %v766 = vsub.f32 1.0, %v765
        %v767 = vmul.f32 %v764, %v766
        %v768 = vadd.f32 %v764, %v767
        %vm769 = vweird.f32 %v764
        %v770 = vsel %vm769, %v764, %v768
        %v771 = vmul.f32 %v763, %v770
        %v772 = vadd.f32 %v771, 1e-05
        %v773 = vrsqrt.pop %v772
        %v774 = vmul.f32 %v773, %v772
        %v775 = vmul.f32 %v774, %v773
        %v776 = vmul.f32 0.5, %v775
        %v777 = vsub.f32 1.5, %v776
        %v778 = vmul.f32 %v773, %v777
        %vm779 = vweird.f32 %v772
        %vm780 = vweird.f32 %v773
        %vm781 = vmor %vm779, %vm780
        %v782 = vsel %vm781, %v773, %v778
        %v783 = vmul.f32 %v759, %v782
        %v784 = vld [vmem:[%s3] sm:$0x1]
        %v786 = vperm.slane %v784, 0
        %v788 = vmul.f32 %v783, %v786
        %v789 = vadd.f32 %v788, %v248
        %790 = vst [vmem:[%s247] sm:$0xff] %v789
        %s791 = sand.u32 %s119, 1
        %s792 = scalar_lea.sflag [#allocation4], %s791
        %s793 = sand.u32 %s119, 1
        %s794 = smul.addr %s793, 8
        %s795 = scalar_lea.vmem [#allocation8], %s794
        // Predicated region
        $region49: #{_apply.1} parent=35 // pred_check
          %p796 = pneg %p129
        $region50: #{_apply.1} parent=35 // pred_check_branch
          %798 = sbr.rel (%p796) target = $region52
        $region51: #{_apply.1} parent=35 // pred_region
          %800 = vsyncadd %s792, 0
          %s801 = smul.addr %s22, 8
          %s802 = scalar_lea.hbm %s4, %s801
          %s804 = sshll.u32 %s795, 4
          %s805 = int_to_ptr.vmem [resolvable:$true] %s804
          %s806 = sshll.u32 %s802, 4
          %s807 = int_to_ptr.hbm [resolvable:$true] %s806
          %809 = dma.vmem_to_hbm [thread:$0]  %s805, 128, %s807, %s792
        $region52: #{_apply.1} parent=35 // pred_fallthru
          _
      $region36: #{_apply.1} parent=5 // pred_fallthru
        _
      %p810 = scmp.le.s32.totalorder 2, %s17
      // Predicated region
      $region53: #{_apply.1} parent=5 // pred_check
        %p811 = pneg %p810
      $region54: #{_apply.1} parent=5 // pred_check_branch
        %813 = sbr.rel (%p811) target = $region56
      $region55: #{_apply.1} parent=5 // pred_region
        %s814 = ssub.s32 %s17, 2
        // Predicated region
        $region57: #{_apply.1} parent=55 // pred_check
          %p815 = pneg %p135
        $region58: #{_apply.1} parent=55 // pred_check_branch
          %817 = sbr.rel (%p815) target = $region60
        $region59: #{_apply.1} parent=55 // pred_region
          %s818 = sand.u32 %s120, 1
          %s819 = scalar_lea.sflag [#allocation4], %s818
          %s820 = sand.u32 %s120, 1
          %s821 = smul.addr %s820, 8
          %s822 = scalar_lea.vmem [#allocation8], %s821
          %824 = dma.done %s819, 128
        $region60: #{_apply.1} parent=55 // pred_fallthru
          _
      $region56: #{_apply.1} parent=5 // pred_fallthru
        _
    $region6: #{_apply.1} parent=1 // loop_footer
      %s21 = sadd.s32 1, %s17
    $region7: #{_apply.1} parent=1 // loop_footer_branch
      %16 = sbr.rel target = $region3
    $region8: #{_apply.1} parent=1 // loop_exit
      _
    %825 = vsyncpa [#allocation3], 1
    %s826 = scalar_lea.sflag [#allocation3], 1
    %827 = vsyncpa %s826, 1
    %828 = vsyncpa [#allocation6], 1
    %829 = vsyncpa [#allocation4], 1
    %s830 = scalar_lea.sflag [#allocation4], 1
    %831 = vsyncpa %s830, 1

</llo_original>
